<compile_context>
chip_gen: v7x
topology: tpu7x:2x2x1
jax: 0.10.0
libtpu: 0.0.40
codegen_flags: <defaults>
</compile_context>

<pallas_src>
import functools

import jax
import jax.numpy as jnp
from jax.experimental import pallas as pl
from jax.experimental.pallas import tpu as pltpu


# ---------------------------------------------------------------------------
# VMEM budgeting (generation-aware), lane-padding-aware tile sizing.
# ---------------------------------------------------------------------------
@functools.lru_cache(maxsize=None)
def _vmem_limit_bytes():
    cap = 64 << 20  # conservative default: v7x per-TensorCore physical VMEM
    try:
        cap = int(getattr(pltpu.get_tpu_info(), "vmem_capacity_bytes", cap))
    except Exception:
        pass
    # Leave 16 MiB headroom for internal scratch; never request more than
    # 64 MiB scoped (v5e/v6e: 128 MiB physical, v7x: 64 MiB physical).
    return max(min(cap - (16 << 20), 64 << 20), 16 << 20)


def _round_up(x, m):
    return (x + m - 1) // m * m


def _tile_rows(total_rows, per_row_bytes):
    """Rows per block given double-buffered, lane-padded bytes per row."""
    budget = _vmem_limit_bytes() - (8 << 20)  # headroom for resident constants
    t = budget // max(per_row_bytes, 1)
    if t >= total_rows:
        return total_rows            # single full block (no 8-divisibility needed)
    return max((t // 8) * 8, 8)


# ---------------------------------------------------------------------------
# General path: out[i, j] = alpha[i, 0] * c[j] + b[j]   (VPU broadcast FMA)
# ---------------------------------------------------------------------------
def _general_kernel(alpha_ref, cb_ref, out_ref):
    out_ref[...] = alpha_ref[...] * cb_ref[0:1, :] + cb_ref[1:2, :]


def _interp_general(alpha, cb, n, d):
    td = d if d <= 1024 else 512                      # D-axis split for wide D
    # double-buffered bytes per row: lane-padded out tile + lane-padded alpha
    per_row = 2 * (_round_up(td, 128) + 128) * 4
    tn = _tile_rows(n, per_row)
    grid = (pl.cdiv(n, tn), pl.cdiv(d, td))
    return pl.pallas_call(
        _general_kernel,
        out_shape=jax.ShapeDtypeStruct((n, d), jnp.float32),
        grid=grid,
        in_specs=[
            pl.BlockSpec((tn, 1), lambda i, j: (i, 0)),
            pl.BlockSpec((2, td), lambda i, j: (0, j)),   # tiny, resident-ish
        ],
        out_specs=pl.BlockSpec((tn, td), lambda i, j: (i, j)),
        compiler_params=pltpu.CompilerParams(
            dimension_semantics=("parallel", "parallel"),
            vmem_limit_bytes=_vmem_limit_bytes()),
    )(alpha, cb)


# ---------------------------------------------------------------------------
# Lane-dense packed path for D < 128 with 128 % D == 0.
# Flat output viewed as (N*D/128, 128); each packed row holds r = 128/D
# consecutive alphas.  Expansion + scaling by c is a single MXU selection
# matmul (sel_c[k, l] = c[l % D] if l // D == k else 0); b is added on the VPU.
# ---------------------------------------------------------------------------
def _packed_kernel(alpha_ref, selc_ref, brep_ref, out_ref):
    out_ref[...] = jnp.dot(
        alpha_ref[...], selc_ref[...],
        preferred_element_type=jnp.float32,
        precision=jax.lax.Precision.HIGHEST) + brep_ref[...]


def _packed_consts(c, b, d):
    r = 128 // d
    lane = jnp.arange(128)
    onehot = (lane[None, :] // d == jnp.arange(r)[:, None]).astype(jnp.float32)
    c_rep = jnp.tile(c.reshape(1, d), (1, r))   # (1, 128): c[l % d]
    b_rep = jnp.tile(b.reshape(1, d), (1, r))   # (1, 128): b[l % d]
    sel_c = onehot * c_rep                      # fold c into the selection matrix
    return sel_c, b_rep


def _interp_packed(alpha, sel_c, b_rep, n, d):
    r = 128 // d
    rows = (n * d) // 128
    alpha_p = alpha.reshape(rows, r)            # free row-major reshape
    # double-buffered bytes per packed row: 128-lane out + lane-padded alpha
    per_row = 2 * (128 + 128) * 4
    tg = _tile_rows(rows, per_row)
    grid = (pl.cdiv(rows, tg),)
    out = pl.pallas_call(
        _packed_kernel,
        out_shape=jax.ShapeDtypeStruct((rows, 128), jnp.float32),
        grid=grid,
        in_specs=[
            pl.BlockSpec((tg, r), lambda i: (i, 0)),
            pl.BlockSpec((r, 128), lambda i: (0, 0)),     # resident constants
            pl.BlockSpec((1, 128), lambda i: (0, 0)),
        ],
        out_specs=pl.BlockSpec((tg, 128), lambda i: (i, 0)),
        compiler_params=pltpu.CompilerParams(
            dimension_semantics=("parallel",),
            vmem_limit_bytes=_vmem_limit_bytes()),
    )(alpha_p, sel_c, b_rep)
    return out.reshape(n, d)                    # free row-major reshape


# ---------------------------------------------------------------------------
# Public API
# ---------------------------------------------------------------------------
def segment_interpolate(alpha, c, b):
    """alpha: (N, 1) or (N,), c: (1, D), b: (1, D)  ->  (N, D) float32."""
    alpha = jnp.asarray(alpha, jnp.float32).reshape(-1, 1)
    c = jnp.asarray(c, jnp.float32).reshape(1, -1)
    b = jnp.asarray(b, jnp.float32).reshape(1, -1)
    n, d = alpha.shape[0], c.shape[1]
    if d < 128 and 128 % d == 0 and n * d >= 128 and n % (128 // d) == 0:
        sel_c, b_rep = _packed_consts(c, b, d)
        return _interp_packed(alpha, sel_c, b_rep, n, d)
    return _interp_general(alpha, jnp.concatenate([c, b], axis=0), n, d)


class SegmentInterpolator:
    """JAX mirror of the PyTorch module (parameter glue in plain JAX)."""

    def __init__(self, pt0, pt1, device=None, domain=None):
        del device, domain  # unused on TPU/JAX side
        pt0 = jnp.asarray(pt0, jnp.float32)
        pt1 = jnp.asarray(pt1, jnp.float32)
        assert pt0.shape == pt1.shape, f"shapes: {pt0.shape} {pt1.shape}"
        self.c = (pt1 - pt0)[0][None, :]
        self.b = pt0[0][None, :]
        self.d = int(self.c.shape[1])
        # Constants built once here (not per call): stacked cb for the general
        # path, selection matrix / replicated bias for the packed path.
        self._cb = jnp.concatenate([self.c, self.b], axis=0)
        if self.d < 128 and 128 % self.d == 0:
            self._selc, self._brep = _packed_consts(self.c, self.b, self.d)
        else:
            self._selc = self._brep = None

    def __call__(self, alpha):
        alpha = jnp.asarray(alpha, jnp.float32).reshape(-1, 1)
        n = alpha.shape[0]
        if (self._selc is not None and n * self.d >= 128
                and n % (128 // self.d) == 0):
            return _interp_packed(alpha, self._selc, self._brep, n, self.d)
        return _interp_general(alpha, self._cb, n, self.d)


if __name__ == "__main__":
    key = jax.random.PRNGKey(0)
    k0, k1, k2, k3, k4, k5, k6 = jax.random.split(key, 7)

    # ---- Case 1: demo shapes (N=8, D=32) -> lane-dense packed path (MXU sel) --
    D, N = 32, 8
    pt0 = jax.random.normal(k0, (1, D), dtype=jnp.float32)
    pt1 = jax.random.normal(k1, (1, D), dtype=jnp.float32)
    alpha = jax.random.uniform(k2, (N, 1), dtype=jnp.float32)

    interp = SegmentInterpolator(pt0, pt1)
    out = jax.block_until_ready(interp(alpha))
    ref = alpha * (pt1 - pt0)[0][None, :] + pt0[0][None, :]
    assert out.shape == (N, D)
    assert jnp.allclose(out, ref, atol=1e-5, rtol=1e-5), "packed-path mismatch"

    # ---- Case 2: D=48 (not a divisor of 128) -> general tiled path -----------
    D2, N2 = 48, 8
    pt0b = jax.random.normal(k3, (1, D2), dtype=jnp.float32)
    pt1b = jax.random.normal(k4, (1, D2), dtype=jnp.float32)
    alpha2 = jax.random.uniform(k2, (N2, 1), dtype=jnp.float32)

    out2 = jax.block_until_ready(SegmentInterpolator(pt0b, pt1b)(alpha2))
    ref2 = alpha2 * (pt1b - pt0b)[0][None, :] + pt0b[0][None, :]
    assert out2.shape == (N2, D2)
    assert jnp.allclose(out2, ref2, atol=1e-5, rtol=1e-5), "general-path mismatch"

    # ---- Case 3: D=256 (>=128, multiple of 128) -> general lane-dense path ----
    D3, N3 = 256, 16
    pt0c = jax.random.normal(k5, (1, D3), dtype=jnp.float32)
    pt1c = jax.random.normal(k6, (1, D3), dtype=jnp.float32)
    alpha3 = jax.random.uniform(k2, (N3, 1), dtype=jnp.float32)

    out3 = jax.block_until_ready(SegmentInterpolator(pt0c, pt1c)(alpha3))
    ref3 = alpha3 * (pt1c - pt0c)[0][None, :] + pt0c[0][None, :]
    assert out3.shape == (N3, D3)
    assert jnp.allclose(out3, ref3, atol=1e-5, rtol=1e-5), "wide-D mismatch"

    print("KERNEL_OK")
</pallas_src>

<mosaic_0001>
module attributes {stable_mosaic.version = 11 : i64} {
  func.func @_packed_kernel(%arg0: i32, %arg1: memref<2x4xf32, #tpu.memory_space<vmem>>, %arg2: memref<4x128xf32, #tpu.memory_space<vmem>>, %arg3: memref<1x128xf32, #tpu.memory_space<vmem>>, %arg4: memref<2x128xf32, #tpu.memory_space<vmem>>) attributes {dimension_semantics = [#tpu.dimension_semantics<parallel>], iteration_bounds = array<i64: 1>, scalar_prefetch = 0 : i64, scratch_operands = 0 : i64, tpu.core_type = #tpu.core_type<tc>, window_params = [{transform_indices = @transform_0, window_bounds = array<i64: 2, 4>}, {pipeline_mode = #tpu.pipeline_mode<synchronous>, transform_indices = @transform_1, window_bounds = array<i64: 4, 128>}, {pipeline_mode = #tpu.pipeline_mode<synchronous>, transform_indices = @transform_2, window_bounds = array<i64: 1, 128>}, {transform_indices = @transform_3, window_bounds = array<i64: 2, 128>}]} {
    %c0 = arith.constant 0 : index
    %c0_0 = arith.constant 0 : index
    %0 = vector.load %arg1[%c0, %c0_0] : memref<2x4xf32, #tpu.memory_space<vmem>>, vector<2x4xf32>
    %c0_1 = arith.constant 0 : index
    %c0_2 = arith.constant 0 : index
    %1 = vector.load %arg2[%c0_1, %c0_2] : memref<4x128xf32, #tpu.memory_space<vmem>>, vector<4x128xf32>
    %cst = arith.constant dense<0.000000e+00> : vector<2x128xf32>
    %2 = tpu.matmul %0, %1, %cst {dimension_numbers = #tpu.dot_dimension_numbers<[1], [0], [0], [1], [0, 0, 1, 1], [], []>, precision = #tpu.contract_precision<fp32>} : vector<2x4xf32>, vector<4x128xf32>, vector<2x128xf32> -> vector<2x128xf32>
    %c0_3 = arith.constant 0 : index
    %c0_4 = arith.constant 0 : index
    %3 = vector.load %arg3[%c0_3, %c0_4] : memref<1x128xf32, #tpu.memory_space<vmem>>, vector<1x128xf32>
    %4 = vector.broadcast %3 : vector<1x128xf32> to vector<2x128xf32>
    %5 = arith.addf %2, %4 : vector<2x128xf32>
    %c0_5 = arith.constant 0 : index
    %c0_6 = arith.constant 0 : index
    %6 = vector.load %arg4[%c0_5, %c0_6] : memref<2x128xf32, #tpu.memory_space<vmem>>, vector<2x128xf32>
    tpu.vector_store %arg4[%c0_5, %c0_6], %5 {strides = array<i32>} : memref<2x128xf32, #tpu.memory_space<vmem>>, vector<2x128xf32>,
    return
  }
  func.func @transform_0(%arg0: i32) -> (i32, i32) {
    %c0_i32 = arith.constant 0 : i32
    %c0_i32_0 = arith.constant 0 : i32
    return %arg0, %c0_i32 : i32, i32
  }
  func.func @transform_1(%arg0: i32) -> (i32, i32) {
    %c0_i32 = arith.constant 0 : i32
    %c0_i32_0 = arith.constant 0 : i32
    %c0_i32_1 = arith.constant 0 : i32
    return %c0_i32, %c0_i32_0 : i32, i32
  }
  func.func @transform_2(%arg0: i32) -> (i32, i32) {
    %c0_i32 = arith.constant 0 : i32
    %c0_i32_0 = arith.constant 0 : i32
    %c0_i32_1 = arith.constant 0 : i32
    return %c0_i32, %c0_i32_0 : i32, i32
  }
  func.func @transform_3(%arg0: i32) -> (i32, i32) {
    %c0_i32 = arith.constant 0 : i32
    %c0_i32_0 = arith.constant 0 : i32
    return %arg0, %c0_i32 : i32, i32
  }
}

</mosaic_0001>

<llo_original>
// kernel: tpu_custom_call.1
$region0: #{tpu_custom_call.1}
  #allocation0 [shape = 'u32[]', space=smem, size = 0x4, offset = 0x4, fixed_abs, tag = 'smem constant byte address 0x4 - core index']
  #allocation1 [shape = 'u32[144,128]{1,0:T(1,128)}', space=vmem, size = 0x12000, scoped, tag = 'internal scratch']
  %s0 = inlined_call_operand.hbm [shape: f32[2,4], index: 0, kind: input, shape index: {}]
  %s1 = inlined_call_operand.hbm [shape: f32[4,128], index: 1, kind: input, shape index: {}]
  %s2 = inlined_call_operand.vmem [shape: f32[1,128], index: 2, kind: input, shape index: {}]
  %s3 = inlined_call_operand.hbm [shape: f32[2,128], index: 3, kind: output, shape index: {}]
  %s4 = sld [smem:[#allocation0]]
  $region30: #{tpu_custom_call.1} parent=0
    _
  %s6 = ssub.s32 1, %s4
  %s7 = scalar_select 0, %s6, %s4
  $region1: #{tpu_custom_call.1} parent=0
    #allocation2 [shape = 'u8[1024]{0}', space=vmem, size = 0x400, scoped, tag = 'input window, operand 0, single buffered']
    #allocation3 [shape = 's32[1]{0}', space=sflag, size = 0x4, scoped, tag = 'scoped memory for tpu_custom_call.1']
    #allocation4 [shape = 's32[1]{0}', space=sflag, size = 0x4, scoped, tag = 'scoped memory for tpu_custom_call.1']
    #allocation5 [shape = 'u8[2048]{0}', space=vmem, size = 0x800, scoped, tag = 'input window, operand 1, single buffered']
    #allocation6 [shape = 's32[1]{0}', space=sflag, size = 0x4, scoped, tag = 'scoped memory for tpu_custom_call.1']
    #allocation7 [shape = 'u8[1024]{0}', space=vmem, size = 0x400, scoped, tag = 'output window, operand 0, single buffered']
    %8 = vsyncpa [#allocation3], 0
    %9 = vsyncpa [#allocation6], 0
    %10 = vsyncpa [#allocation4], 0
    // Predicated region
    $region2: #{tpu_custom_call.1} parent=1 // pred_check
      _
    $region3: #{tpu_custom_call.1} parent=1 // pred_check_branch
      %12 = sbr.rel (0) target = $region5
    $region4: #{tpu_custom_call.1} parent=1 // pred_region
      %s14 = ssub.s32 32, 32
      %15 = vsyncadd [#allocation3], %s14
      %s17 = sshll.u32 [#allocation2], 4
      %s18 = int_to_ptr.vmem [resolvable:$true] %s17
      %20 = dma.hbm_to_vmem [thread:$0]  %s0, 32, %s18, [#allocation3]
    $region5: #{tpu_custom_call.1} parent=1 // pred_fallthru
      _
    // Predicated region
    $region6: #{tpu_custom_call.1} parent=1 // pred_check
      _
    $region7: #{tpu_custom_call.1} parent=1 // pred_check_branch
      %22 = sbr.rel (0) target = $region9
    $region8: #{tpu_custom_call.1} parent=1 // pred_region
      %s24 = ssub.s32 64, 64
      %25 = vsyncadd [#allocation6], %s24
      %s27 = sshll.u32 [#allocation5], 4
      %s28 = int_to_ptr.vmem [resolvable:$true] %s27
      %30 = dma.hbm_to_vmem [thread:$0]  %s1, 64, %s28, [#allocation6]
    $region9: #{tpu_custom_call.1} parent=1 // pred_fallthru
      _
    // Predicated region
    $region10: #{tpu_custom_call.1} parent=1 // pred_check
      _
    $region11: #{tpu_custom_call.1} parent=1 // pred_check_branch
      %32 = sbr.rel (0) target = $region13
    $region12: #{tpu_custom_call.1} parent=1 // pred_region
      _
    $region13: #{tpu_custom_call.1} parent=1 // pred_fallthru
      _
    // Predicated region
    $region14: #{tpu_custom_call.1} parent=1 // pred_check
      _
    $region15: #{tpu_custom_call.1} parent=1 // pred_check_branch
      %34 = sbr.rel (0) target = $region17
    $region16: #{tpu_custom_call.1} parent=1 // pred_region
      %35 = dma.done [#allocation3], 32
    $region17: #{tpu_custom_call.1} parent=1 // pred_fallthru
      _
    // Predicated region
    $region18: #{tpu_custom_call.1} parent=1 // pred_check
      _
    $region19: #{tpu_custom_call.1} parent=1 // pred_check_branch
      %37 = sbr.rel (0) target = $region21
    $region20: #{tpu_custom_call.1} parent=1 // pred_region
      %38 = dma.done [#allocation6], 64
    $region21: #{tpu_custom_call.1} parent=1 // pred_fallthru
      _
    %v39 = vld [vmem:[#allocation2] sm:$0x3]
    %v40 = vld [vmem:[#allocation5] sm:$0xf]
    %v41 = vld [vmem:[%s2] sm:$0x1]
    %v43 = vlaneseq
    %v44 = vshrl.u32 %v43, 7
    %v45 = vsub.s32 0, %v44
    %v46 = vrot.slane %v41, %v45
    %vm48 = vcmask 31744
    %v50 = vsel %vm48, %v39, 0
    %vm52 = vcmask 1043456
    %v54 = vsel %vm52, %v40, 0
    %56 = vmatprep.subr.mxu0 0.0
    %v57 = vand.u32 %v54, 4294901760
    %58 = vmatpush1.msra.mxu0 %v57
    %59 = vmatprep.subr.mxu0 0.0
    %60 = vmatpush1.msra.mxu0 0.0
    %61 = vmatprep.subr.mxu0 0.0
    %62 = vmatpush1.msra.mxu0 0.0
    %63 = vmatprep.subr.mxu0 0.0
    %64 = vmatpush1.msra.mxu0 0.0
    %65 = vmatprep.subr.mxu0 0.0
    %66 = vmatpush1.msra.mxu0 0.0
    %67 = vmatprep.subr.mxu0 0.0
    %68 = vmatpush1.msra.mxu0 0.0
    %69 = vmatprep.subr.mxu0 0.0
    %70 = vmatpush1.msra.mxu0 0.0
    %71 = vmatprep.subr.mxu0 0.0
    %72 = vmatpush1.msra.mxu0 0.0
    %73 = vmatprep.subr.mxu0 0.0
    %74 = vmatpush1.msra.mxu0 0.0
    %75 = vmatprep.subr.mxu0 0.0
    %76 = vmatpush1.msra.mxu0 0.0
    %77 = vmatprep.subr.mxu0 0.0
    %78 = vmatpush1.msra.mxu0 0.0
    %79 = vmatprep.subr.mxu0 0.0
    %80 = vmatpush1.msra.mxu0 0.0
    %81 = vmatprep.subr.mxu0 0.0
    %82 = vmatpush1.msra.mxu0 0.0
    %83 = vmatprep.subr.mxu0 0.0
    %84 = vmatpush1.msra.mxu0 0.0
    %85 = vmatprep.subr.mxu0 0.0
    %86 = vmatpush1.msra.mxu0 0.0
    %87 = vmatprep.subr.mxu0 0.0
    %88 = vmatpush1.msra.mxu0 0.0
    %89 = vmatprep.subr.mxu0 0.0
    %90 = vmatpush1.msra.mxu0 0.0
    %91 = vmatprep.subr.mxu0 0.0
    %92 = vmatpush1.msra.mxu0 0.0
    %93 = vmatprep.subr.mxu0 0.0
    %94 = vmatpush1.msra.mxu0 0.0
    %95 = vmatprep.subr.mxu0 0.0
    %96 = vmatpush1.msra.mxu0 0.0
    %97 = vmatprep.subr.mxu0 0.0
    %98 = vmatpush1.msra.mxu0 0.0
    %99 = vmatprep.subr.mxu0 0.0
    %100 = vmatpush1.msra.mxu0 0.0
    %101 = vmatprep.subr.mxu0 0.0
    %102 = vmatpush1.msra.mxu0 0.0
    %103 = vmatprep.subr.mxu0 0.0
    %104 = vmatpush1.msra.mxu0 0.0
    %105 = vmatprep.subr.mxu0 0.0
    %106 = vmatpush1.msra.mxu0 0.0
    %107 = vmatprep.subr.mxu0 0.0
    %108 = vmatpush1.msra.mxu0 0.0
    %109 = vmatprep.subr.mxu0 0.0
    %110 = vmatpush1.msra.mxu0 0.0
    %111 = vmatprep.subr.mxu0 0.0
    %112 = vmatpush1.msra.mxu0 0.0
    %113 = vmatprep.subr.mxu0 0.0
    %114 = vmatpush1.msra.mxu0 0.0
    %115 = vmatprep.subr.mxu0 0.0
    %116 = vmatpush1.msra.mxu0 0.0
    %117 = vmatprep.subr.mxu0 0.0
    %118 = vmatpush1.msra.mxu0 0.0
    %119 = vmatprep.subr.mxu0 0.0
    %120 = vmatpush1.msra.mxu0 0.0
    %121 = vmatprep.mubr.f32.mxu0 0.0
    %v122 = vand.u32 %v50, 4294901760
    %v123 = vsub.f32 %v50, %v122
    %v124 = vand.u32 %v123, 4294901760
    %v125 = vsub.f32 %v123, %v124
    %v126 = vand.u32 %v125, 4294901760
    %127 = vmatmul.mubr.f32.gmra.mrb[0].mxu0 %v126
    %v128 = vpop.f32.mrb[0].mxu0
    %v129 = vadd.f32 %v46, %v128
    %v130 = vpop.f32.mrb[0].mxu0
    %131 = vdwg.mxu0
    %132 = vmatprep.subr.mxu0 0.0
    %v133 = vand.u32 %v54, 4294901760
    %v134 = vsub.f32 %v54, %v133
    %v135 = vand.u32 %v134, 4294901760
    %v136 = vsub.f32 %v134, %v135
    %v137 = vand.u32 %v136, 4294901760
    %138 = vmatpush1.msra.mxu0 %v137
    %139 = vmatprep.subr.mxu0 0.0
    %140 = vmatpush1.msra.mxu0 0.0
    %141 = vmatprep.subr.mxu0 0.0
    %142 = vmatpush1.msra.mxu0 0.0
    %143 = vmatprep.subr.mxu0 0.0
    %144 = vmatpush1.msra.mxu0 0.0
    %145 = vmatprep.subr.mxu0 0.0
    %146 = vmatpush1.msra.mxu0 0.0
    %147 = vmatprep.subr.mxu0 0.0
    %148 = vmatpush1.msra.mxu0 0.0
    %149 = vmatprep.subr.mxu0 0.0
    %150 = vmatpush1.msra.mxu0 0.0
    %151 = vmatprep.subr.mxu0 0.0
    %152 = vmatpush1.msra.mxu0 0.0
    %153 = vmatprep.subr.mxu0 0.0
    %154 = vmatpush1.msra.mxu0 0.0
    %155 = vmatprep.subr.mxu0 0.0
    %156 = vmatpush1.msra.mxu0 0.0
    %157 = vmatprep.subr.mxu0 0.0
    %158 = vmatpush1.msra.mxu0 0.0
    %159 = vmatprep.subr.mxu0 0.0
    %160 = vmatpush1.msra.mxu0 0.0
    %161 = vmatprep.subr.mxu0 0.0
    %162 = vmatpush1.msra.mxu0 0.0
    %163 = vmatprep.subr.mxu0 0.0
    %164 = vmatpush1.msra.mxu0 0.0
    %165 = vmatprep.subr.mxu0 0.0
    %166 = vmatpush1.msra.mxu0 0.0
    %167 = vmatprep.subr.mxu0 0.0
    %168 = vmatpush1.msra.mxu0 0.0
    %169 = vmatprep.subr.mxu0 0.0
    %170 = vmatpush1.msra.mxu0 0.0
    %171 = vmatprep.subr.mxu0 0.0
    %172 = vmatpush1.msra.mxu0 0.0
    %173 = vmatprep.subr.mxu0 0.0
    %174 = vmatpush1.msra.mxu0 0.0
    %175 = vmatprep.subr.mxu0 0.0
    %176 = vmatpush1.msra.mxu0 0.0
    %177 = vmatprep.subr.mxu0 0.0
    %178 = vmatpush1.msra.mxu0 0.0
    %179 = vmatprep.subr.mxu0 0.0
    %180 = vmatpush1.msra.mxu0 0.0
    %181 = vmatprep.subr.mxu0 0.0
    %182 = vmatpush1.msra.mxu0 0.0
    %183 = vmatprep.subr.mxu0 0.0
    %184 = vmatpush1.msra.mxu0 0.0
    %185 = vmatprep.subr.mxu0 0.0
    %186 = vmatpush1.msra.mxu0 0.0
    %187 = vmatprep.subr.mxu0 0.0
    %188 = vmatpush1.msra.mxu0 0.0
    %189 = vmatprep.subr.mxu0 0.0
    %190 = vmatpush1.msra.mxu0 0.0
    %191 = vmatprep.subr.mxu0 0.0
    %192 = vmatpush1.msra.mxu0 0.0
    %193 = vmatprep.subr.mxu0 0.0
    %194 = vmatpush1.msra.mxu0 0.0
    %195 = vmatprep.subr.mxu0 0.0
    %196 = vmatpush1.msra.mxu0 0.0
    %197 = vmatprep.subr.mxu0 0.0
    %198 = vmatpush1.msra.mxu0 0.0
    %199 = vmatprep.subr.mxu0 0.0
    %200 = vmatpush1.msra.mxu0 0.0
    %201 = vmatprep.mubr.f32.mxu0 0.0
    %v202 = vand.u32 %v50, 4294901760
    %203 = vmatmul.mubr.f32.gmra.mrb[0].mxu0 %v202
    %v204 = vpop.f32.mrb[0].mxu0
    %v205 = vadd.f32 %v129, %v204
    %v206 = vpop.f32.mrb[0].mxu0
    %207 = vdwg.mxu0
    %208 = vmatprep.subr.mxu0 0.0
    %v209 = vand.u32 %v54, 4294901760
    %v210 = vsub.f32 %v54, %v209
    %211 = vmatpush1.msra.mxu0 %v210
    %212 = vmatprep.subr.mxu0 0.0
    %213 = vmatpush1.msra.mxu0 0.0
    %214 = vmatprep.subr.mxu0 0.0
    %215 = vmatpush1.msra.mxu0 0.0
    %216 = vmatprep.subr.mxu0 0.0
    %217 = vmatpush1.msra.mxu0 0.0
    %218 = vmatprep.subr.mxu0 0.0
    %219 = vmatpush1.msra.mxu0 0.0
    %220 = vmatprep.subr.mxu0 0.0
    %221 = vmatpush1.msra.mxu0 0.0
    %222 = vmatprep.subr.mxu0 0.0
    %223 = vmatpush1.msra.mxu0 0.0
    %224 = vmatprep.subr.mxu0 0.0
    %225 = vmatpush1.msra.mxu0 0.0
    %226 = vmatprep.subr.mxu0 0.0
    %227 = vmatpush1.msra.mxu0 0.0
    %228 = vmatprep.subr.mxu0 0.0
    %229 = vmatpush1.msra.mxu0 0.0
    %230 = vmatprep.subr.mxu0 0.0
    %231 = vmatpush1.msra.mxu0 0.0
    %232 = vmatprep.subr.mxu0 0.0
    %233 = vmatpush1.msra.mxu0 0.0
    %234 = vmatprep.subr.mxu0 0.0
    %235 = vmatpush1.msra.mxu0 0.0
    %236 = vmatprep.subr.mxu0 0.0
    %237 = vmatpush1.msra.mxu0 0.0
    %238 = vmatprep.subr.mxu0 0.0
    %239 = vmatpush1.msra.mxu0 0.0
    %240 = vmatprep.subr.mxu0 0.0
    %241 = vmatpush1.msra.mxu0 0.0
    %242 = vmatprep.subr.mxu0 0.0
    %243 = vmatpush1.msra.mxu0 0.0
    %244 = vmatprep.subr.mxu0 0.0
    %245 = vmatpush1.msra.mxu0 0.0
    %246 = vmatprep.subr.mxu0 0.0
    %247 = vmatpush1.msra.mxu0 0.0
    %248 = vmatprep.subr.mxu0 0.0
    %249 = vmatpush1.msra.mxu0 0.0
    %250 = vmatprep.subr.mxu0 0.0
    %251 = vmatpush1.msra.mxu0 0.0
    %252 = vmatprep.subr.mxu0 0.0
    %253 = vmatpush1.msra.mxu0 0.0
    %254 = vmatprep.subr.mxu0 0.0
    %255 = vmatpush1.msra.mxu0 0.0
    %256 = vmatprep.subr.mxu0 0.0
    %257 = vmatpush1.msra.mxu0 0.0
    %258 = vmatprep.subr.mxu0 0.0
    %259 = vmatpush1.msra.mxu0 0.0
    %260 = vmatprep.subr.mxu0 0.0
    %261 = vmatpush1.msra.mxu0 0.0
    %262 = vmatprep.subr.mxu0 0.0
    %263 = vmatpush1.msra.mxu0 0.0
    %264 = vmatprep.subr.mxu0 0.0
    %265 = vmatpush1.msra.mxu0 0.0
    %266 = vmatprep.subr.mxu0 0.0
    %267 = vmatpush1.msra.mxu0 0.0
    %268 = vmatprep.subr.mxu0 0.0
    %269 = vmatpush1.msra.mxu0 0.0
    %270 = vmatprep.subr.mxu0 0.0
    %271 = vmatpush1.msra.mxu0 0.0
    %272 = vmatprep.subr.mxu0 0.0
    %273 = vmatpush1.msra.mxu0 0.0
    %274 = vmatprep.mubr.f32.mxu0 0.0
    %v275 = vand.u32 %v50, 4294901760
    %v276 = vsub.f32 %v50, %v275
    %277 = vmatmul.mubr.f32.gmra.mrb[0].mxu0 %v276
    %v278 = vpop.f32.mrb[0].mxu0
    %v279 = vadd.f32 %v205, %v278
    %v280 = vpop.f32.mrb[0].mxu0
    %281 = vdwg.mxu0
    %282 = vmatprep.subr.mxu0 0.0
    %v283 = vand.u32 %v54, 4294901760
    %284 = vmatpush1.msra.mxu0 %v283
    %285 = vmatprep.subr.mxu0 0.0
    %286 = vmatpush1.msra.mxu0 0.0
    %287 = vmatprep.subr.mxu0 0.0
    %288 = vmatpush1.msra.mxu0 0.0
    %289 = vmatprep.subr.mxu0 0.0
    %290 = vmatpush1.msra.mxu0 0.0
    %291 = vmatprep.subr.mxu0 0.0
    %292 = vmatpush1.msra.mxu0 0.0
    %293 = vmatprep.subr.mxu0 0.0
    %294 = vmatpush1.msra.mxu0 0.0
    %295 = vmatprep.subr.mxu0 0.0
    %296 = vmatpush1.msra.mxu0 0.0
    %297 = vmatprep.subr.mxu0 0.0
    %298 = vmatpush1.msra.mxu0 0.0
    %299 = vmatprep.subr.mxu0 0.0
    %300 = vmatpush1.msra.mxu0 0.0
    %301 = vmatprep.subr.mxu0 0.0
    %302 = vmatpush1.msra.mxu0 0.0
    %303 = vmatprep.subr.mxu0 0.0
    %304 = vmatpush1.msra.mxu0 0.0
    %305 = vmatprep.subr.mxu0 0.0
    %306 = vmatpush1.msra.mxu0 0.0
    %307 = vmatprep.subr.mxu0 0.0
    %308 = vmatpush1.msra.mxu0 0.0
    %309 = vmatprep.subr.mxu0 0.0
    %310 = vmatpush1.msra.mxu0 0.0
    %311 = vmatprep.subr.mxu0 0.0
    %312 = vmatpush1.msra.mxu0 0.0
    %313 = vmatprep.subr.mxu0 0.0
    %314 = vmatpush1.msra.mxu0 0.0
    %315 = vmatprep.subr.mxu0 0.0
    %316 = vmatpush1.msra.mxu0 0.0
    %317 = vmatprep.subr.mxu0 0.0
    %318 = vmatpush1.msra.mxu0 0.0
    %319 = vmatprep.subr.mxu0 0.0
    %320 = vmatpush1.msra.mxu0 0.0
    %321 = vmatprep.subr.mxu0 0.0
    %322 = vmatpush1.msra.mxu0 0.0
    %323 = vmatprep.subr.mxu0 0.0
    %324 = vmatpush1.msra.mxu0 0.0
    %325 = vmatprep.subr.mxu0 0.0
    %326 = vmatpush1.msra.mxu0 0.0
    %327 = vmatprep.subr.mxu0 0.0
    %328 = vmatpush1.msra.mxu0 0.0
    %329 = vmatprep.subr.mxu0 0.0
    %330 = vmatpush1.msra.mxu0 0.0
    %331 = vmatprep.subr.mxu0 0.0
    %332 = vmatpush1.msra.mxu0 0.0
    %333 = vmatprep.subr.mxu0 0.0
    %334 = vmatpush1.msra.mxu0 0.0
    %335 = vmatprep.subr.mxu0 0.0
    %336 = vmatpush1.msra.mxu0 0.0
    %337 = vmatprep.subr.mxu0 0.0
    %338 = vmatpush1.msra.mxu0 0.0
    %339 = vmatprep.subr.mxu0 0.0
    %340 = vmatpush1.msra.mxu0 0.0
    %341 = vmatprep.subr.mxu0 0.0
    %342 = vmatpush1.msra.mxu0 0.0
    %343 = vmatprep.subr.mxu0 0.0
    %344 = vmatpush1.msra.mxu0 0.0
    %345 = vmatprep.subr.mxu0 0.0
    %346 = vmatpush1.msra.mxu0 0.0
    %347 = vmatprep.mubr.f32.mxu0 0.0
    %v348 = vand.u32 %v50, 4294901760
    %v349 = vsub.f32 %v50, %v348
    %v350 = vand.u32 %v349, 4294901760
    %351 = vmatmul.mubr.f32.gmra.mrb[0].mxu0 %v350
    %v352 = vpop.f32.mrb[0].mxu0
    %v353 = vadd.f32 %v279, %v352
    %v354 = vpop.f32.mrb[0].mxu0
    %355 = vdwg.mxu0
    %356 = vmatprep.subr.mxu0 0.0
    %v357 = vand.u32 %v54, 4294901760
    %v358 = vsub.f32 %v54, %v357
    %v359 = vand.u32 %v358, 4294901760
    %360 = vmatpush1.msra.mxu0 %v359
    %361 = vmatprep.subr.mxu0 0.0
    %362 = vmatpush1.msra.mxu0 0.0
    %363 = vmatprep.subr.mxu0 0.0
    %364 = vmatpush1.msra.mxu0 0.0
    %365 = vmatprep.subr.mxu0 0.0
    %366 = vmatpush1.msra.mxu0 0.0
    %367 = vmatprep.subr.mxu0 0.0
    %368 = vmatpush1.msra.mxu0 0.0
    %369 = vmatprep.subr.mxu0 0.0
    %370 = vmatpush1.msra.mxu0 0.0
    %371 = vmatprep.subr.mxu0 0.0
    %372 = vmatpush1.msra.mxu0 0.0
    %373 = vmatprep.subr.mxu0 0.0
    %374 = vmatpush1.msra.mxu0 0.0
    %375 = vmatprep.subr.mxu0 0.0
    %376 = vmatpush1.msra.mxu0 0.0
    %377 = vmatprep.subr.mxu0 0.0
    %378 = vmatpush1.msra.mxu0 0.0
    %379 = vmatprep.subr.mxu0 0.0
    %380 = vmatpush1.msra.mxu0 0.0
    %381 = vmatprep.subr.mxu0 0.0
    %382 = vmatpush1.msra.mxu0 0.0
    %383 = vmatprep.subr.mxu0 0.0
    %384 = vmatpush1.msra.mxu0 0.0
    %385 = vmatprep.subr.mxu0 0.0
    %386 = vmatpush1.msra.mxu0 0.0
    %387 = vmatprep.subr.mxu0 0.0
    %388 = vmatpush1.msra.mxu0 0.0
    %389 = vmatprep.subr.mxu0 0.0
    %390 = vmatpush1.msra.mxu0 0.0
    %391 = vmatprep.subr.mxu0 0.0
    %392 = vmatpush1.msra.mxu0 0.0
    %393 = vmatprep.subr.mxu0 0.0
    %394 = vmatpush1.msra.mxu0 0.0
    %395 = vmatprep.subr.mxu0 0.0
    %396 = vmatpush1.msra.mxu0 0.0
    %397 = vmatprep.subr.mxu0 0.0
    %398 = vmatpush1.msra.mxu0 0.0
    %399 = vmatprep.subr.mxu0 0.0
    %400 = vmatpush1.msra.mxu0 0.0
    %401 = vmatprep.subr.mxu0 0.0
    %402 = vmatpush1.msra.mxu0 0.0
    %403 = vmatprep.subr.mxu0 0.0
    %404 = vmatpush1.msra.mxu0 0.0
    %405 = vmatprep.subr.mxu0 0.0
    %406 = vmatpush1.msra.mxu0 0.0
    %407 = vmatprep.subr.mxu0 0.0
    %408 = vmatpush1.msra.mxu0 0.0
    %409 = vmatprep.subr.mxu0 0.0
    %410 = vmatpush1.msra.mxu0 0.0
    %411 = vmatprep.subr.mxu0 0.0
    %412 = vmatpush1.msra.mxu0 0.0
    %413 = vmatprep.subr.mxu0 0.0
    %414 = vmatpush1.msra.mxu0 0.0
    %415 = vmatprep.subr.mxu0 0.0
    %416 = vmatpush1.msra.mxu0 0.0
    %417 = vmatprep.subr.mxu0 0.0
    %418 = vmatpush1.msra.mxu0 0.0
    %419 = vmatprep.subr.mxu0 0.0
    %420 = vmatpush1.msra.mxu0 0.0
    %421 = vmatprep.subr.mxu0 0.0
    %422 = vmatpush1.msra.mxu0 0.0
    %423 = vmatprep.mubr.f32.mxu0 0.0
    %v424 = vand.u32 %v50, 4294901760
    %425 = vmatmul.mubr.f32.gmra.mrb[0].mxu0 %v424
    %v426 = vpop.f32.mrb[0].mxu0
    %v427 = vadd.f32 %v353, %v426
    %v428 = vpop.f32.mrb[0].mxu0
    %429 = vdwg.mxu0
    %430 = vmatprep.subr.mxu0 0.0
    %v431 = vand.u32 %v54, 4294901760
    %432 = vmatpush1.msra.mxu0 %v431
    %433 = vmatprep.subr.mxu0 0.0
    %434 = vmatpush1.msra.mxu0 0.0
    %435 = vmatprep.subr.mxu0 0.0
    %436 = vmatpush1.msra.mxu0 0.0
    %437 = vmatprep.subr.mxu0 0.0
    %438 = vmatpush1.msra.mxu0 0.0
    %439 = vmatprep.subr.mxu0 0.0
    %440 = vmatpush1.msra.mxu0 0.0
    %441 = vmatprep.subr.mxu0 0.0
    %442 = vmatpush1.msra.mxu0 0.0
    %443 = vmatprep.subr.mxu0 0.0
    %444 = vmatpush1.msra.mxu0 0.0
    %445 = vmatprep.subr.mxu0 0.0
    %446 = vmatpush1.msra.mxu0 0.0
    %447 = vmatprep.subr.mxu0 0.0
    %448 = vmatpush1.msra.mxu0 0.0
    %449 = vmatprep.subr.mxu0 0.0
    %450 = vmatpush1.msra.mxu0 0.0
    %451 = vmatprep.subr.mxu0 0.0
    %452 = vmatpush1.msra.mxu0 0.0
    %453 = vmatprep.subr.mxu0 0.0
    %454 = vmatpush1.msra.mxu0 0.0
    %455 = vmatprep.subr.mxu0 0.0
    %456 = vmatpush1.msra.mxu0 0.0
    %457 = vmatprep.subr.mxu0 0.0
    %458 = vmatpush1.msra.mxu0 0.0
    %459 = vmatprep.subr.mxu0 0.0
    %460 = vmatpush1.msra.mxu0 0.0
    %461 = vmatprep.subr.mxu0 0.0
    %462 = vmatpush1.msra.mxu0 0.0
    %463 = vmatprep.subr.mxu0 0.0
    %464 = vmatpush1.msra.mxu0 0.0
    %465 = vmatprep.subr.mxu0 0.0
    %466 = vmatpush1.msra.mxu0 0.0
    %467 = vmatprep.subr.mxu0 0.0
    %468 = vmatpush1.msra.mxu0 0.0
    %469 = vmatprep.subr.mxu0 0.0
    %470 = vmatpush1.msra.mxu0 0.0
    %471 = vmatprep.subr.mxu0 0.0
    %472 = vmatpush1.msra.mxu0 0.0
    %473 = vmatprep.subr.mxu0 0.0
    %474 = vmatpush1.msra.mxu0 0.0
    %475 = vmatprep.subr.mxu0 0.0
    %476 = vmatpush1.msra.mxu0 0.0
    %477 = vmatprep.subr.mxu0 0.0
    %478 = vmatpush1.msra.mxu0 0.0
    %479 = vmatprep.subr.mxu0 0.0
    %480 = vmatpush1.msra.mxu0 0.0
    %481 = vmatprep.subr.mxu0 0.0
    %482 = vmatpush1.msra.mxu0 0.0
    %483 = vmatprep.subr.mxu0 0.0
    %484 = vmatpush1.msra.mxu0 0.0
    %485 = vmatprep.subr.mxu0 0.0
    %486 = vmatpush1.msra.mxu0 0.0
    %487 = vmatprep.subr.mxu0 0.0
    %488 = vmatpush1.msra.mxu0 0.0
    %489 = vmatprep.subr.mxu0 0.0
    %490 = vmatpush1.msra.mxu0 0.0
    %491 = vmatprep.subr.mxu0 0.0
    %492 = vmatpush1.msra.mxu0 0.0
    %493 = vmatprep.subr.mxu0 0.0
    %494 = vmatpush1.msra.mxu0 0.0
    %495 = vmatprep.mubr.f32.mxu0 0.0
    %v496 = vand.u32 %v50, 4294901760
    %497 = vmatmul.mubr.f32.gmra.mrb[0].mxu0 %v496
    %v498 = vpop.f32.mrb[0].mxu0
    %v499 = vadd.f32 %v427, %v498
    %v500 = vpop.f32.mrb[0].mxu0
    %501 = vdwg.mxu0
    %502 = vst [vmem:[#allocation7] sm:$0x3] %v499
    // Predicated region
    $region22: #{tpu_custom_call.1} parent=1 // pred_check
      _
    $region23: #{tpu_custom_call.1} parent=1 // pred_check_branch
      %504 = sbr.rel (0) target = $region25
    $region24: #{tpu_custom_call.1} parent=1 // pred_region
      %s506 = ssub.s32 32, 32
      %507 = vsyncadd [#allocation4], %s506
      %s509 = sshll.u32 [#allocation7], 4
      %s510 = int_to_ptr.vmem [resolvable:$true] %s509
      %512 = dma.vmem_to_hbm [thread:$0]  %s510, 32, %s3, [#allocation4]
    $region25: #{tpu_custom_call.1} parent=1 // pred_fallthru
      _
    // Predicated region
    $region26: #{tpu_custom_call.1} parent=1 // pred_check
      _
    $region27: #{tpu_custom_call.1} parent=1 // pred_check_branch
      %514 = sbr.rel (0) target = $region29
    $region28: #{tpu_custom_call.1} parent=1 // pred_region
      %515 = dma.done [#allocation4], 32
    $region29: #{tpu_custom_call.1} parent=1 // pred_fallthru
      _
    %516 = vsyncpa [#allocation3], 1
    %517 = vsyncpa [#allocation6], 1
    %518 = vsyncpa [#allocation4], 1

</llo_original>
